<compile_context>
chip_gen: v5e
topology: v5e:2x2
jax: 0.10.0
libtpu: 0.0.40
codegen_flags: <defaults>
</compile_context>

<pallas_src>
import jax
import jax.numpy as jnp
from jax.experimental import pallas as pl
from jax.experimental.pallas import tpu as pltpu

NEG_SLOPE = 0.01  # F.leaky_relu default negative_slope


def _round_up(x, m):
    return ((x + m - 1) // m) * m


def _feature_block_kernel(x_ref, w_ref, o_ref):
    # x_ref: (tm, c_in)   tile of the flattened (n*s*h, c_in) input
    # w_ref: (c_in, c_out) full weight, VMEM-resident across grid steps
    # o_ref: (tm, c_out)  lane-dense output tile (c_out >= 128 -> full vst)
    x = x_ref[...].astype(w_ref.dtype)          # bf16 on the MXU
    acc = jnp.dot(x, w_ref[...], preferred_element_type=jnp.float32)
    # leaky_relu(x) == max(x, slope*x) for 0 < slope < 1 (single vmax+vmul)
    o_ref[...] = jnp.maximum(acc, NEG_SLOPE * acc).astype(o_ref.dtype)


def feature_block(x3d, weight, *, tm=1024, compute_dtype=jnp.bfloat16,
                  out_dtype=None):
    """forward_block: bias-free feature projection + LeakyReLU.

    x3d: (B, h, c_in) -> (B, h, c_out);  weight: (c_in, c_out).
    Pass out_dtype=jnp.bfloat16 to halve HBM write traffic when downstream
    layers accept bf16; default preserves the input dtype.
    """
    B, h, c_in = x3d.shape
    c_out = weight.shape[1]
    M = B * h
    out_dtype = x3d.dtype if out_dtype is None else jnp.dtype(out_dtype)

    x2 = x3d.reshape(M, c_in)  # view, no data movement
    # Hoisted cast: only cast if the caller didn't already provide
    # compute-dtype weights (cast once at parameter-init time is preferred).
    w2 = weight if weight.dtype == compute_dtype else weight.astype(compute_dtype)

    # Single full block for small M (no pointless serial split on 1-TC
    # v5e/v6e); 1024-row tiles for large M (>=512-row per-TC tiles on v7x).
    tm = max(8, min(tm, _round_up(M, 8)))
    grid_m = pl.cdiv(M, tm)

    cost = pl.CostEstimate(
        flops=2 * M * c_in * c_out,
        transcendentals=0,
        bytes_accessed=(x2.size * x2.dtype.itemsize
                        + M * c_out * out_dtype.itemsize
                        + w2.size * w2.dtype.itemsize),
    )

    out_flat = pl.pallas_call(
        _feature_block_kernel,
        out_shape=jax.ShapeDtypeStruct((M, c_out), out_dtype),
        grid_spec=pltpu.PrefetchScalarGridSpec(
            num_scalar_prefetch=0,
            grid=(grid_m,),
            in_specs=[
                pl.BlockSpec((tm, c_in), lambda i: (i, 0)),
                pl.BlockSpec((c_in, c_out), lambda i: (0, 0)),
            ],
            out_specs=pl.BlockSpec((tm, c_out), lambda i: (i, 0)),
        ),
        compiler_params=pltpu.CompilerParams(
            # "parallel": no-op on 1-TC v5e/v6e, shards grid steps on v7x.
            dimension_semantics=("parallel",),
            # ~3 MiB used at tm=1024; 32 MiB is safe on all generations
            # (incl. v7x's 64 MiB physical VMEM).
            vmem_limit_bytes=32 * 1024 * 1024,
        ),
        cost_estimate=cost,
    )(x2, w2)
    return out_flat.reshape(B, h, c_out)


def set_block_feature(x, forward_block):
    """SetBlock_feature.forward: (n, s, h, c) -> (n, s, h', c')."""
    # TODO(synk): `forward_block` is a constructor argument in the PyTorch
    # module (and `pooling` is stored but unused in its forward); it is
    # instantiated here as a concrete feature projection + LeakyReLU block.
    n, s, h, c = x.shape
    y = forward_block(x.reshape(n * s, h, c))
    _, h2, c2 = y.shape
    return y.reshape(n, s, h2, c2)


def _reference(x, weight, out_dtype):
    n, s, h, c_in = x.shape
    c_out = weight.shape[1]
    r = jnp.dot(
        x.reshape(n * s * h, c_in).astype(jnp.bfloat16),
        weight.astype(jnp.bfloat16),
        preferred_element_type=jnp.float32,
    )
    r = jnp.maximum(r, NEG_SLOPE * r).astype(out_dtype)
    return r.reshape(n, s, h, c_out)


if __name__ == "__main__":
    key = jax.random.PRNGKey(0)
    kx, kw, kx2 = jax.random.split(key, 3)

    # ---- Case 1: small demo shape, matches the module's implied layout ----
    #   n=2 subjects, s=8 frames, h=16 bins, c_in=128 -> c_out=256 features.
    n, s, h, c_in, c_out = 2, 8, 16, 128, 256
    x = jax.random.normal(kx, (n, s, h, c_in), dtype=jnp.float32)
    # deterministic synthetic weights (xavier-ish scale), cast ONCE to bf16
    # at init time (hoisted out of the per-call wrapper path).
    weight_f32 = jax.random.normal(kw, (c_in, c_out), dtype=jnp.float32) * 0.07
    weight = weight_f32.astype(jnp.bfloat16)

    block = lambda x3d: feature_block(x3d, weight)  # f32 output (module dtype)
    out = jax.block_until_ready(set_block_feature(x, block))
    ref = _reference(x, weight_f32, jnp.float32)
    assert out.shape == (n, s, h, c_out)
    assert jnp.allclose(out, ref, atol=1e-2, rtol=1e-2), float(
        jnp.max(jnp.abs(out - ref)))

    # ---- Case 2: larger M with ragged last tile + bf16 output path --------
    n2, s2, h2 = 4, 16, 130  # M = 8320 -> 9 grid steps at tm=1024 (last ragged)
    x2 = jax.random.normal(kx2, (n2, s2, h2, c_in), dtype=jnp.float32)
    block_bf16 = lambda x3d: feature_block(x3d, weight, out_dtype=jnp.bfloat16)
    out2 = jax.block_until_ready(set_block_feature(x2, block_bf16))
    ref2 = _reference(x2, weight_f32, jnp.bfloat16)
    assert out2.shape == (n2, s2, h2, c_out)
    assert jnp.allclose(out2.astype(jnp.float32), ref2.astype(jnp.float32),
                        atol=2e-2, rtol=2e-2), float(
        jnp.max(jnp.abs(out2.astype(jnp.float32) - ref2.astype(jnp.float32))))

    print("KERNEL_OK")
</pallas_src>

<mosaic_0001>
module attributes {stable_mosaic.version = 11 : i64} {
  func.func @_feature_block_kernel(%arg0: i32, %arg1: memref<256x128xf32, #tpu.memory_space<vmem>>, %arg2: memref<128x256xbf16, #tpu.memory_space<vmem>>, %arg3: memref<256x256xf32, #tpu.memory_space<vmem>>) attributes {dimension_semantics = [#tpu.dimension_semantics<parallel>], iteration_bounds = array<i64: 1>, scalar_prefetch = 0 : i64, scratch_operands = 0 : i64, tpu.core_type = #tpu.core_type<tc>, window_params = [{transform_indices = @transform_0, window_bounds = array<i64: 256, 128>}, {pipeline_mode = #tpu.pipeline_mode<synchronous>, transform_indices = @transform_1, window_bounds = array<i64: 128, 256>}, {transform_indices = @transform_2, window_bounds = array<i64: 256, 256>}]} {
    %c0 = arith.constant 0 : index
    %c0_0 = arith.constant 0 : index
    %0 = vector.load %arg1[%c0, %c0_0] : memref<256x128xf32, #tpu.memory_space<vmem>>, vector<256x128xf32>
    %1 = arith.truncf %0 : vector<256x128xf32> to vector<256x128xbf16>
    %c0_1 = arith.constant 0 : index
    %c0_2 = arith.constant 0 : index
    %2 = vector.load %arg2[%c0_1, %c0_2] : memref<128x256xbf16, #tpu.memory_space<vmem>>, vector<128x256xbf16>
    %cst = arith.constant dense<0.000000e+00> : vector<256x256xf32>
    %3 = tpu.matmul %1, %2, %cst {dimension_numbers = #tpu.dot_dimension_numbers<[1], [0], [0], [1], [0, 0, 1, 1], [], []>} : vector<256x128xbf16>, vector<128x256xbf16>, vector<256x256xf32> -> vector<256x256xf32>
    %cst_3 = arith.constant 0.00999999977 : f32
    %4 = vector.broadcast %cst_3 : f32 to vector<256x256xf32>
    %5 = arith.mulf %4, %3 : vector<256x256xf32>
    %6 = arith.maximumf %3, %5 : vector<256x256xf32>
    %c0_4 = arith.constant 0 : index
    %c0_5 = arith.constant 0 : index
    %7 = vector.load %arg3[%c0_4, %c0_5] : memref<256x256xf32, #tpu.memory_space<vmem>>, vector<256x256xf32>
    tpu.vector_store %arg3[%c0_4, %c0_5], %6 {strides = array<i32>} : memref<256x256xf32, #tpu.memory_space<vmem>>, vector<256x256xf32>,
    return
  }
  func.func @transform_0(%arg0: i32) -> (i32, i32) {
    %c0_i32 = arith.constant 0 : i32
    %c0_i32_0 = arith.constant 0 : i32
    return %arg0, %c0_i32 : i32, i32
  }
  func.func @transform_1(%arg0: i32) -> (i32, i32) {
    %c0_i32 = arith.constant 0 : i32
    %c0_i32_0 = arith.constant 0 : i32
    %c0_i32_1 = arith.constant 0 : i32
    return %c0_i32, %c0_i32_0 : i32, i32
  }
  func.func @transform_2(%arg0: i32) -> (i32, i32) {
    %c0_i32 = arith.constant 0 : i32
    %c0_i32_0 = arith.constant 0 : i32
    return %arg0, %c0_i32 : i32, i32
  }
}

</mosaic_0001>

<llo_original>
// kernel: tpu_custom_call.1
$region0: #{tpu_custom_call.1}
  #allocation0 [shape = 'u32[]', space=smem, size = 0x4, offset = 0x4, fixed_abs, tag = 'smem constant byte address 0x4 - core index']
  #allocation1 [shape = 'u32[72,128]{1,0:T(1,128)}', space=vmem, size = 0x9000, scoped, tag = 'internal scratch']
  %s0 = inlined_call_operand.hbm [shape: f32[256,128], index: 0, kind: input, shape index: {}]
  %s1 = inlined_call_operand.hbm [shape: bf16[128,256], index: 1, kind: input, shape index: {}]
  %s2 = inlined_call_operand.hbm [shape: f32[256,256], index: 2, kind: output, shape index: {}]
  %s3 = sld [smem:[#allocation0]]
  $region26: #{tpu_custom_call.1} parent=0
    _
  %s5 = ssub.s32 1, %s3
  %s6 = scalar_select 0, %s5, %s3
  $region1: #{tpu_custom_call.1} parent=0
    #allocation2 [shape = 'u8[131072]{0}', space=vmem, size = 0x20000, scoped, tag = 'input window, operand 0, single buffered']
    #allocation3 [shape = 's32[1]{0}', space=sflag, size = 0x4, scoped, tag = 'scoped memory for tpu_custom_call.1']
    #allocation4 [shape = 's32[1]{0}', space=sflag, size = 0x4, scoped, tag = 'scoped memory for tpu_custom_call.1']
    #allocation5 [shape = 'u8[65536]{0}', space=vmem, size = 0x10000, scoped, tag = 'input window, operand 1, single buffered']
    #allocation6 [shape = 's32[1]{0}', space=sflag, size = 0x4, scoped, tag = 'scoped memory for tpu_custom_call.1']
    #allocation7 [shape = 'u8[262144]{0}', space=vmem, size = 0x40000, scoped, tag = 'output window, operand 0, single buffered']
    %7 = vsyncpa [#allocation3], 0
    %8 = vsyncpa [#allocation6], 0
    %9 = vsyncpa [#allocation4], 0
    // Predicated region
    $region2: #{tpu_custom_call.1} parent=1 // pred_check
      _
    $region3: #{tpu_custom_call.1} parent=1 // pred_check_branch
      %11 = sbr.rel (0) target = $region5
    $region4: #{tpu_custom_call.1} parent=1 // pred_region
      %13 = vsyncadd [#allocation3], 0
      %s14 = sshll.u32 %s0, 4
      %s15 = int_to_ptr.hbm [resolvable:$true] %s14
      %s16 = sshll.u32 [#allocation2], 4
      %s17 = int_to_ptr.vmem [resolvable:$true] %s16
      %22 = dma.hbm_to_vmem [thread:$0]  %s15, 4096, %s17, [#allocation3], 128, 128, 8
    $region5: #{tpu_custom_call.1} parent=1 // pred_fallthru
      _
    // Predicated region
    $region6: #{tpu_custom_call.1} parent=1 // pred_check
      _
    $region7: #{tpu_custom_call.1} parent=1 // pred_check_branch
      %24 = sbr.rel (0) target = $region9
    $region8: #{tpu_custom_call.1} parent=1 // pred_region
      %26 = vsyncadd [#allocation6], 0
      %s27 = sshll.u32 %s1, 4
      %s28 = int_to_ptr.hbm [resolvable:$true] %s27
      %s29 = sshll.u32 [#allocation5], 4
      %s30 = int_to_ptr.vmem [resolvable:$true] %s29
      %35 = dma.hbm_to_vmem [thread:$0]  %s28, 2048, %s30, [#allocation6], 128, 128, 8
    $region9: #{tpu_custom_call.1} parent=1 // pred_fallthru
      _
    // Predicated region
    $region10: #{tpu_custom_call.1} parent=1 // pred_check
      _
    $region11: #{tpu_custom_call.1} parent=1 // pred_check_branch
      %37 = sbr.rel (0) target = $region13
    $region12: #{tpu_custom_call.1} parent=1 // pred_region
      %39 = dma.done [#allocation3], 4096
    $region13: #{tpu_custom_call.1} parent=1 // pred_fallthru
      _
    // Predicated region
    $region14: #{tpu_custom_call.1} parent=1 // pred_check
      _
    $region15: #{tpu_custom_call.1} parent=1 // pred_check_branch
      %41 = sbr.rel (0) target = $region17
    $region16: #{tpu_custom_call.1} parent=1 // pred_region
      %43 = dma.done [#allocation6], 2048
    $region17: #{tpu_custom_call.1} parent=1 // pred_fallthru
      _
    %v44 = vld [vmem:[#allocation2] sm:$0xff]
    %v45 = vld [vmem:[#allocation2 + $0x8] sm:$0xff]
    %v46 = vld [vmem:[#allocation2 + $0x10] sm:$0xff]
    %v47 = vld [vmem:[#allocation2 + $0x18] sm:$0xff]
    %v48 = vld [vmem:[#allocation2 + $0x20] sm:$0xff]
    %v49 = vld [vmem:[#allocation2 + $0x28] sm:$0xff]
    %v50 = vld [vmem:[#allocation2 + $0x30] sm:$0xff]
    %v51 = vld [vmem:[#allocation2 + $0x38] sm:$0xff]
    %v52 = vld [vmem:[#allocation2 + $0x40] sm:$0xff]
    %v53 = vld [vmem:[#allocation2 + $0x48] sm:$0xff]
    %v54 = vld [vmem:[#allocation2 + $0x50] sm:$0xff]
    %v55 = vld [vmem:[#allocation2 + $0x58] sm:$0xff]
    %v56 = vld [vmem:[#allocation2 + $0x60] sm:$0xff]
    %v57 = vld [vmem:[#allocation2 + $0x68] sm:$0xff]
    %v58 = vld [vmem:[#allocation2 + $0x70] sm:$0xff]
    %v59 = vld [vmem:[#allocation2 + $0x78] sm:$0xff]
    %v60 = vld [vmem:[#allocation2 + $0x80] sm:$0xff]
    %v61 = vld [vmem:[#allocation2 + $0x88] sm:$0xff]
    %v62 = vld [vmem:[#allocation2 + $0x90] sm:$0xff]
    %v63 = vld [vmem:[#allocation2 + $0x98] sm:$0xff]
    %v64 = vld [vmem:[#allocation2 + $0xa0] sm:$0xff]
    %v65 = vld [vmem:[#allocation2 + $0xa8] sm:$0xff]
    %v66 = vld [vmem:[#allocation2 + $0xb0] sm:$0xff]
    %v67 = vld [vmem:[#allocation2 + $0xb8] sm:$0xff]
    %v68 = vld [vmem:[#allocation2 + $0xc0] sm:$0xff]
    %v69 = vld [vmem:[#allocation2 + $0xc8] sm:$0xff]
    %v70 = vld [vmem:[#allocation2 + $0xd0] sm:$0xff]
    %v71 = vld [vmem:[#allocation2 + $0xd8] sm:$0xff]
    %v72 = vld [vmem:[#allocation2 + $0xe0] sm:$0xff]
    %v73 = vld [vmem:[#allocation2 + $0xe8] sm:$0xff]
    %v74 = vld [vmem:[#allocation2 + $0xf0] sm:$0xff]
    %v75 = vld [vmem:[#allocation2 + $0xf8] sm:$0xff]
    %v76 = vpack.c.bf16 %v45, %v44
    %v77 = vpack.c.bf16 %v47, %v46
    %v78 = vpack.c.bf16 %v49, %v48
    %v79 = vpack.c.bf16 %v51, %v50
    %v80 = vpack.c.bf16 %v53, %v52
    %v81 = vpack.c.bf16 %v55, %v54
    %v82 = vpack.c.bf16 %v57, %v56
    %v83 = vpack.c.bf16 %v59, %v58
    %v84 = vpack.c.bf16 %v61, %v60
    %v85 = vpack.c.bf16 %v63, %v62
    %v86 = vpack.c.bf16 %v65, %v64
    %v87 = vpack.c.bf16 %v67, %v66
    %v88 = vpack.c.bf16 %v69, %v68
    %v89 = vpack.c.bf16 %v71, %v70
    %v90 = vpack.c.bf16 %v73, %v72
    %v91 = vpack.c.bf16 %v75, %v74
    %v92 = vld [vmem:[#allocation5] sm:$0xff]
    %v93 = vld [vmem:[#allocation5 + $0x8] sm:$0xff]
    %v94 = vld [vmem:[#allocation5 + $0x10] sm:$0xff]
    %v95 = vld [vmem:[#allocation5 + $0x18] sm:$0xff]
    %v96 = vld [vmem:[#allocation5 + $0x20] sm:$0xff]
    %v97 = vld [vmem:[#allocation5 + $0x28] sm:$0xff]
    %v98 = vld [vmem:[#allocation5 + $0x30] sm:$0xff]
    %v99 = vld [vmem:[#allocation5 + $0x38] sm:$0xff]
    %v100 = vld [vmem:[#allocation5 + $0x40] sm:$0xff]
    %v101 = vld [vmem:[#allocation5 + $0x48] sm:$0xff]
    %v102 = vld [vmem:[#allocation5 + $0x50] sm:$0xff]
    %v103 = vld [vmem:[#allocation5 + $0x58] sm:$0xff]
    %v104 = vld [vmem:[#allocation5 + $0x60] sm:$0xff]
    %v105 = vld [vmem:[#allocation5 + $0x68] sm:$0xff]
    %v106 = vld [vmem:[#allocation5 + $0x70] sm:$0xff]
    %v107 = vld [vmem:[#allocation5 + $0x78] sm:$0xff]
    %v124 = vunpack.c.l.b16 %v92
    %v125 = vunpack.c.h.b16 %v92
    %v126 = vunpack.c.l.b16 %v93
    %v127 = vunpack.c.h.b16 %v93
    %v128 = vunpack.c.l.b16 %v94
    %v129 = vunpack.c.h.b16 %v94
    %v130 = vunpack.c.l.b16 %v95
    %v131 = vunpack.c.h.b16 %v95
    %v132 = vunpack.c.l.b16 %v96
    %v133 = vunpack.c.h.b16 %v96
    %v134 = vunpack.c.l.b16 %v97
    %v135 = vunpack.c.h.b16 %v97
    %v136 = vunpack.c.l.b16 %v98
    %v137 = vunpack.c.h.b16 %v98
    %v138 = vunpack.c.l.b16 %v99
    %v139 = vunpack.c.h.b16 %v99
    %v140 = vunpack.c.l.b16 %v100
    %v141 = vunpack.c.h.b16 %v100
    %v142 = vunpack.c.l.b16 %v101
    %v143 = vunpack.c.h.b16 %v101
    %v144 = vunpack.c.l.b16 %v102
    %v145 = vunpack.c.h.b16 %v102
    %v146 = vunpack.c.l.b16 %v103
    %v147 = vunpack.c.h.b16 %v103
    %v148 = vunpack.c.l.b16 %v104
    %v149 = vunpack.c.h.b16 %v104
    %v150 = vunpack.c.l.b16 %v105
    %v151 = vunpack.c.h.b16 %v105
    %v152 = vunpack.c.l.b16 %v106
    %v153 = vunpack.c.h.b16 %v106
    %v154 = vunpack.c.l.b16 %v107
    %v155 = vunpack.c.h.b16 %v107
    %v156 = vpack.c.b16 %v126, %v124
    %v157 = vpack.c.b16 %v127, %v125
    %v158 = vpack.c.b16 %v130, %v128
    %v159 = vpack.c.b16 %v131, %v129
    %v160 = vpack.c.b16 %v134, %v132
    %v161 = vpack.c.b16 %v135, %v133
    %v162 = vpack.c.b16 %v138, %v136
    %v163 = vpack.c.b16 %v139, %v137
    %v164 = vpack.c.b16 %v142, %v140
    %v165 = vpack.c.b16 %v143, %v141
    %v166 = vpack.c.b16 %v146, %v144
    %v167 = vpack.c.b16 %v147, %v145
    %v168 = vpack.c.b16 %v150, %v148
    %v169 = vpack.c.b16 %v151, %v149
    %v170 = vpack.c.b16 %v154, %v152
    %v171 = vpack.c.b16 %v155, %v153
    %188 = vmatpush.bf16.msra.mxu0 %v170
    %189 = vmatpush.bf16.msra.mxu0 %v168
    %190 = vmatpush.bf16.msra.mxu0 %v166
    %191 = vmatpush.bf16.msra.mxu0 %v164
    %192 = vmatpush.bf16.msra.mxu0 %v162
    %193 = vmatpush.bf16.msra.mxu0 %v160
    %194 = vmatpush.bf16.msra.mxu0 %v158
    %195 = vmatpush.bf16.msra.mxu0 %v156
    %196 = vmatmul.bf16.gmra.mxu0 %v76
    %v197 = vpop.f32.mrf.mxu0
    %v198 = vadd.f32 0.0, %v197
    %v199 = vpop.f32.mrf.mxu0
    %v200 = vadd.f32 0.0, %v199
    %201 = vmatmul.bf16.gmra.mxu0 %v77
    %v202 = vpop.f32.mrf.mxu0
    %v203 = vadd.f32 0.0, %v202
    %v204 = vpop.f32.mrf.mxu0
    %v205 = vadd.f32 0.0, %v204
    %206 = vmatmul.bf16.gmra.mxu0 %v78
    %v207 = vpop.f32.mrf.mxu0
    %v208 = vadd.f32 0.0, %v207
    %v209 = vpop.f32.mrf.mxu0
    %v210 = vadd.f32 0.0, %v209
    %211 = vmatmul.bf16.gmra.mxu0 %v79
    %v212 = vpop.f32.mrf.mxu0
    %v213 = vadd.f32 0.0, %v212
    %v214 = vpop.f32.mrf.mxu0
    %v215 = vadd.f32 0.0, %v214
    %216 = vmatmul.bf16.gmra.mxu0 %v80
    %v217 = vpop.f32.mrf.mxu0
    %v218 = vadd.f32 0.0, %v217
    %v219 = vpop.f32.mrf.mxu0
    %v220 = vadd.f32 0.0, %v219
    %221 = vmatmul.bf16.gmra.mxu0 %v81
    %v222 = vpop.f32.mrf.mxu0
    %v223 = vadd.f32 0.0, %v222
    %v224 = vpop.f32.mrf.mxu0
    %v225 = vadd.f32 0.0, %v224
    %226 = vmatmul.bf16.gmra.mxu0 %v82
    %v227 = vpop.f32.mrf.mxu0
    %v228 = vadd.f32 0.0, %v227
    %v229 = vpop.f32.mrf.mxu0
    %v230 = vadd.f32 0.0, %v229
    %231 = vmatmul.bf16.gmra.mxu0 %v83
    %v232 = vpop.f32.mrf.mxu0
    %v233 = vadd.f32 0.0, %v232
    %v234 = vpop.f32.mrf.mxu0
    %v235 = vadd.f32 0.0, %v234
    %236 = vmatmul.bf16.gmra.mxu0 %v84
    %v237 = vpop.f32.mrf.mxu0
    %v238 = vadd.f32 0.0, %v237
    %v239 = vpop.f32.mrf.mxu0
    %v240 = vadd.f32 0.0, %v239
    %241 = vmatmul.bf16.gmra.mxu0 %v85
    %v242 = vpop.f32.mrf.mxu0
    %v243 = vadd.f32 0.0, %v242
    %v244 = vpop.f32.mrf.mxu0
    %v245 = vadd.f32 0.0, %v244
    %246 = vmatmul.bf16.gmra.mxu0 %v86
    %v247 = vpop.f32.mrf.mxu0
    %v248 = vadd.f32 0.0, %v247
    %v249 = vpop.f32.mrf.mxu0
    %v250 = vadd.f32 0.0, %v249
    %251 = vmatmul.bf16.gmra.mxu0 %v87
    %v252 = vpop.f32.mrf.mxu0
    %v253 = vadd.f32 0.0, %v252
    %v254 = vpop.f32.mrf.mxu0
    %v255 = vadd.f32 0.0, %v254
    %256 = vmatmul.bf16.gmra.mxu0 %v88
    %v257 = vpop.f32.mrf.mxu0
    %v258 = vadd.f32 0.0, %v257
    %v259 = vpop.f32.mrf.mxu0
    %v260 = vadd.f32 0.0, %v259
    %261 = vmatmul.bf16.gmra.mxu0 %v89
    %v262 = vpop.f32.mrf.mxu0
    %v263 = vadd.f32 0.0, %v262
    %v264 = vpop.f32.mrf.mxu0
    %v265 = vadd.f32 0.0, %v264
    %266 = vmatmul.bf16.gmra.mxu0 %v90
    %v267 = vpop.f32.mrf.mxu0
    %v268 = vadd.f32 0.0, %v267
    %v269 = vpop.f32.mrf.mxu0
    %v270 = vadd.f32 0.0, %v269
    %271 = vmatmul.bf16.gmra.mxu0 %v91
    %v272 = vpop.f32.mrf.mxu0
    %v273 = vadd.f32 0.0, %v272
    %v274 = vpop.f32.mrf.mxu0
    %v275 = vadd.f32 0.0, %v274
    %276 = vdwg.mxu0
    %277 = vmatpush.bf16.msra.mxu0 %v171
    %278 = vmatpush.bf16.msra.mxu0 %v169
    %279 = vmatpush.bf16.msra.mxu0 %v167
    %280 = vmatpush.bf16.msra.mxu0 %v165
    %281 = vmatpush.bf16.msra.mxu0 %v163
    %282 = vmatpush.bf16.msra.mxu0 %v161
    %283 = vmatpush.bf16.msra.mxu0 %v159
    %284 = vmatpush.bf16.msra.mxu0 %v157
    %285 = vmatmul.bf16.gmra.mxu0 %v76
    %v286 = vpop.f32.mrf.mxu0
    %v287 = vadd.f32 0.0, %v286
    %v288 = vpop.f32.mrf.mxu0
    %v289 = vadd.f32 0.0, %v288
    %290 = vmatmul.bf16.gmra.mxu0 %v77
    %v291 = vpop.f32.mrf.mxu0
    %v292 = vadd.f32 0.0, %v291
    %v293 = vpop.f32.mrf.mxu0
    %v294 = vadd.f32 0.0, %v293
    %295 = vmatmul.bf16.gmra.mxu0 %v78
    %v296 = vpop.f32.mrf.mxu0
    %v297 = vadd.f32 0.0, %v296
    %v298 = vpop.f32.mrf.mxu0
    %v299 = vadd.f32 0.0, %v298
    %300 = vmatmul.bf16.gmra.mxu0 %v79
    %v301 = vpop.f32.mrf.mxu0
    %v302 = vadd.f32 0.0, %v301
    %v303 = vpop.f32.mrf.mxu0
    %v304 = vadd.f32 0.0, %v303
    %305 = vmatmul.bf16.gmra.mxu0 %v80
    %v306 = vpop.f32.mrf.mxu0
    %v307 = vadd.f32 0.0, %v306
    %v308 = vpop.f32.mrf.mxu0
    %v309 = vadd.f32 0.0, %v308
    %310 = vmatmul.bf16.gmra.mxu0 %v81
    %v311 = vpop.f32.mrf.mxu0
    %v312 = vadd.f32 0.0, %v311
    %v313 = vpop.f32.mrf.mxu0
    %v314 = vadd.f32 0.0, %v313
    %315 = vmatmul.bf16.gmra.mxu0 %v82
    %v316 = vpop.f32.mrf.mxu0
    %v317 = vadd.f32 0.0, %v316
    %v318 = vpop.f32.mrf.mxu0
    %v319 = vadd.f32 0.0, %v318
    %320 = vmatmul.bf16.gmra.mxu0 %v83
    %v321 = vpop.f32.mrf.mxu0
    %v322 = vadd.f32 0.0, %v321
    %v323 = vpop.f32.mrf.mxu0
    %v324 = vadd.f32 0.0, %v323
    %325 = vmatmul.bf16.gmra.mxu0 %v84
    %v326 = vpop.f32.mrf.mxu0
    %v327 = vadd.f32 0.0, %v326
    %v328 = vpop.f32.mrf.mxu0
    %v329 = vadd.f32 0.0, %v328
    %330 = vmatmul.bf16.gmra.mxu0 %v85
    %v331 = vpop.f32.mrf.mxu0
    %v332 = vadd.f32 0.0, %v331
    %v333 = vpop.f32.mrf.mxu0
    %v334 = vadd.f32 0.0, %v333
    %335 = vmatmul.bf16.gmra.mxu0 %v86
    %v336 = vpop.f32.mrf.mxu0
    %v337 = vadd.f32 0.0, %v336
    %v338 = vpop.f32.mrf.mxu0
    %v339 = vadd.f32 0.0, %v338
    %340 = vmatmul.bf16.gmra.mxu0 %v87
    %v341 = vpop.f32.mrf.mxu0
    %v342 = vadd.f32 0.0, %v341
    %v343 = vpop.f32.mrf.mxu0
    %v344 = vadd.f32 0.0, %v343
    %345 = vmatmul.bf16.gmra.mxu0 %v88
    %v346 = vpop.f32.mrf.mxu0
    %v347 = vadd.f32 0.0, %v346
    %v348 = vpop.f32.mrf.mxu0
    %v349 = vadd.f32 0.0, %v348
    %350 = vmatmul.bf16.gmra.mxu0 %v89
    %v351 = vpop.f32.mrf.mxu0
    %v352 = vadd.f32 0.0, %v351
    %v353 = vpop.f32.mrf.mxu0
    %v354 = vadd.f32 0.0, %v353
    %355 = vmatmul.bf16.gmra.mxu0 %v90
    %v356 = vpop.f32.mrf.mxu0
    %v357 = vadd.f32 0.0, %v356
    %v358 = vpop.f32.mrf.mxu0
    %v359 = vadd.f32 0.0, %v358
    %360 = vmatmul.bf16.gmra.mxu0 %v91
    %v361 = vpop.f32.mrf.mxu0
    %v362 = vadd.f32 0.0, %v361
    %v363 = vpop.f32.mrf.mxu0
    %v364 = vadd.f32 0.0, %v363
    %365 = vdwg.mxu0
    %v366 = vmul.f32 %v198, 0.01
    %v367 = vmul.f32 %v287, 0.01
    %v368 = vmul.f32 %v200, 0.01
    %v369 = vmul.f32 %v289, 0.01
    %v370 = vmul.f32 %v203, 0.01
    %v371 = vmul.f32 %v292, 0.01
    %v372 = vmul.f32 %v205, 0.01
    %v373 = vmul.f32 %v294, 0.01
    %v374 = vmul.f32 %v208, 0.01
    %v375 = vmul.f32 %v297, 0.01
    %v376 = vmul.f32 %v210, 0.01
    %v377 = vmul.f32 %v299, 0.01
    %v378 = vmul.f32 %v213, 0.01
    %v379 = vmul.f32 %v302, 0.01
    %v380 = vmul.f32 %v215, 0.01
    %v381 = vmul.f32 %v304, 0.01
    %v382 = vmul.f32 %v218, 0.01
    %v383 = vmul.f32 %v307, 0.01
    %v384 = vmul.f32 %v220, 0.01
    %v385 = vmul.f32 %v309, 0.01
    %v386 = vmul.f32 %v223, 0.01
    %v387 = vmul.f32 %v312, 0.01
    %v388 = vmul.f32 %v225, 0.01
    %v389 = vmul.f32 %v314, 0.01
    %v390 = vmul.f32 %v228, 0.01
    %v391 = vmul.f32 %v317, 0.01
    %v392 = vmul.f32 %v230, 0.01
    %v393 = vmul.f32 %v319, 0.01
    %v394 = vmul.f32 %v233, 0.01
    %v395 = vmul.f32 %v322, 0.01
    %v396 = vmul.f32 %v235, 0.01
    %v397 = vmul.f32 %v324, 0.01
    %v398 = vmul.f32 %v238, 0.01
    %v399 = vmul.f32 %v327, 0.01
    %v400 = vmul.f32 %v240, 0.01
    %v401 = vmul.f32 %v329, 0.01
    %v402 = vmul.f32 %v243, 0.01
    %v403 = vmul.f32 %v332, 0.01
    %v404 = vmul.f32 %v245, 0.01
    %v405 = vmul.f32 %v334, 0.01
    %v406 = vmul.f32 %v248, 0.01
    %v407 = vmul.f32 %v337, 0.01
    %v408 = vmul.f32 %v250, 0.01
    %v409 = vmul.f32 %v339, 0.01
    %v410 = vmul.f32 %v253, 0.01
    %v411 = vmul.f32 %v342, 0.01
    %v412 = vmul.f32 %v255, 0.01
    %v413 = vmul.f32 %v344, 0.01
    %v414 = vmul.f32 %v258, 0.01
    %v415 = vmul.f32 %v347, 0.01
    %v416 = vmul.f32 %v260, 0.01
    %v417 = vmul.f32 %v349, 0.01
    %v418 = vmul.f32 %v263, 0.01
    %v419 = vmul.f32 %v352, 0.01
    %v420 = vmul.f32 %v265, 0.01
    %v421 = vmul.f32 %v354, 0.01
    %v422 = vmul.f32 %v268, 0.01
    %v423 = vmul.f32 %v357, 0.01
    %v424 = vmul.f32 %v270, 0.01
    %v425 = vmul.f32 %v359, 0.01
    %v426 = vmul.f32 %v273, 0.01
    %v427 = vmul.f32 %v362, 0.01
    %v428 = vmul.f32 %v275, 0.01
    %v429 = vmul.f32 %v364, 0.01
    %v430 = vmax.f32 %v198, %v366
    %v431 = vmax.f32 %v287, %v367
    %v432 = vmax.f32 %v200, %v368
    %v433 = vmax.f32 %v289, %v369
    %v434 = vmax.f32 %v203, %v370
    %v435 = vmax.f32 %v292, %v371
    %v436 = vmax.f32 %v205, %v372
    %v437 = vmax.f32 %v294, %v373
    %v438 = vmax.f32 %v208, %v374
    %v439 = vmax.f32 %v297, %v375
    %v440 = vmax.f32 %v210, %v376
    %v441 = vmax.f32 %v299, %v377
    %v442 = vmax.f32 %v213, %v378
    %v443 = vmax.f32 %v302, %v379
    %v444 = vmax.f32 %v215, %v380
    %v445 = vmax.f32 %v304, %v381
    %v446 = vmax.f32 %v218, %v382
    %v447 = vmax.f32 %v307, %v383
    %v448 = vmax.f32 %v220, %v384
    %v449 = vmax.f32 %v309, %v385
    %v450 = vmax.f32 %v223, %v386
    %v451 = vmax.f32 %v312, %v387
    %v452 = vmax.f32 %v225, %v388
    %v453 = vmax.f32 %v314, %v389
    %v454 = vmax.f32 %v228, %v390
    %v455 = vmax.f32 %v317, %v391
    %v456 = vmax.f32 %v230, %v392
    %v457 = vmax.f32 %v319, %v393
    %v458 = vmax.f32 %v233, %v394
    %v459 = vmax.f32 %v322, %v395
    %v460 = vmax.f32 %v235, %v396
    %v461 = vmax.f32 %v324, %v397
    %v462 = vmax.f32 %v238, %v398
    %v463 = vmax.f32 %v327, %v399
    %v464 = vmax.f32 %v240, %v400
    %v465 = vmax.f32 %v329, %v401
    %v466 = vmax.f32 %v243, %v402
    %v467 = vmax.f32 %v332, %v403
    %v468 = vmax.f32 %v245, %v404
    %v469 = vmax.f32 %v334, %v405
    %v470 = vmax.f32 %v248, %v406
    %v471 = vmax.f32 %v337, %v407
    %v472 = vmax.f32 %v250, %v408
    %v473 = vmax.f32 %v339, %v409
    %v474 = vmax.f32 %v253, %v410
    %v475 = vmax.f32 %v342, %v411
    %v476 = vmax.f32 %v255, %v412
    %v477 = vmax.f32 %v344, %v413
    %v478 = vmax.f32 %v258, %v414
    %v479 = vmax.f32 %v347, %v415
    %v480 = vmax.f32 %v260, %v416
    %v481 = vmax.f32 %v349, %v417
    %v482 = vmax.f32 %v263, %v418
    %v483 = vmax.f32 %v352, %v419
    %v484 = vmax.f32 %v265, %v420
    %v485 = vmax.f32 %v354, %v421
    %v486 = vmax.f32 %v268, %v422
    %v487 = vmax.f32 %v357, %v423
    %v488 = vmax.f32 %v270, %v424
    %v489 = vmax.f32 %v359, %v425
    %v490 = vmax.f32 %v273, %v426
    %v491 = vmax.f32 %v362, %v427
    %v492 = vmax.f32 %v275, %v428
    %v493 = vmax.f32 %v364, %v429
    %494 = vst [vmem:[#allocation7] sm:$0xff] %v430
    %495 = vst [vmem:[#allocation7 + $0x8] sm:$0xff] %v431
    %496 = vst [vmem:[#allocation7 + $0x10] sm:$0xff] %v432
    %497 = vst [vmem:[#allocation7 + $0x18] sm:$0xff] %v433
    %498 = vst [vmem:[#allocation7 + $0x20] sm:$0xff] %v434
    %499 = vst [vmem:[#allocation7 + $0x28] sm:$0xff] %v435
    %500 = vst [vmem:[#allocation7 + $0x30] sm:$0xff] %v436
    %501 = vst [vmem:[#allocation7 + $0x38] sm:$0xff] %v437
    %502 = vst [vmem:[#allocation7 + $0x40] sm:$0xff] %v438
    %503 = vst [vmem:[#allocation7 + $0x48] sm:$0xff] %v439
    %504 = vst [vmem:[#allocation7 + $0x50] sm:$0xff] %v440
    %505 = vst [vmem:[#allocation7 + $0x58] sm:$0xff] %v441
    %506 = vst [vmem:[#allocation7 + $0x60] sm:$0xff] %v442
    %507 = vst [vmem:[#allocation7 + $0x68] sm:$0xff] %v443
    %508 = vst [vmem:[#allocation7 + $0x70] sm:$0xff] %v444
    %509 = vst [vmem:[#allocation7 + $0x78] sm:$0xff] %v445
    %510 = vst [vmem:[#allocation7 + $0x80] sm:$0xff] %v446
    %511 = vst [vmem:[#allocation7 + $0x88] sm:$0xff] %v447
    %512 = vst [vmem:[#allocation7 + $0x90] sm:$0xff] %v448
    %513 = vst [vmem:[#allocation7 + $0x98] sm:$0xff] %v449
    %514 = vst [vmem:[#allocation7 + $0xa0] sm:$0xff] %v450
    %515 = vst [vmem:[#allocation7 + $0xa8] sm:$0xff] %v451
    %516 = vst [vmem:[#allocation7 + $0xb0] sm:$0xff] %v452
    %517 = vst [vmem:[#allocation7 + $0xb8] sm:$0xff] %v453
    %518 = vst [vmem:[#allocation7 + $0xc0] sm:$0xff] %v454
    %519 = vst [vmem:[#allocation7 + $0xc8] sm:$0xff] %v455
    %520 = vst [vmem:[#allocation7 + $0xd0] sm:$0xff] %v456
    %521 = vst [vmem:[#allocation7 + $0xd8] sm:$0xff] %v457
    %522 = vst [vmem:[#allocation7 + $0xe0] sm:$0xff] %v458
    %523 = vst [vmem:[#allocation7 + $0xe8] sm:$0xff] %v459
    %524 = vst [vmem:[#allocation7 + $0xf0] sm:$0xff] %v460
    %525 = vst [vmem:[#allocation7 + $0xf8] sm:$0xff] %v461
    %526 = vst [vmem:[#allocation7 + $0x100] sm:$0xff] %v462
    %527 = vst [vmem:[#allocation7 + $0x108] sm:$0xff] %v463
    %528 = vst [vmem:[#allocation7 + $0x110] sm:$0xff] %v464
    %529 = vst [vmem:[#allocation7 + $0x118] sm:$0xff] %v465
    %530 = vst [vmem:[#allocation7 + $0x120] sm:$0xff] %v466
    %531 = vst [vmem:[#allocation7 + $0x128] sm:$0xff] %v467
    %532 = vst [vmem:[#allocation7 + $0x130] sm:$0xff] %v468
    %533 = vst [vmem:[#allocation7 + $0x138] sm:$0xff] %v469
    %534 = vst [vmem:[#allocation7 + $0x140] sm:$0xff] %v470
    %535 = vst [vmem:[#allocation7 + $0x148] sm:$0xff] %v471
    %536 = vst [vmem:[#allocation7 + $0x150] sm:$0xff] %v472
    %537 = vst [vmem:[#allocation7 + $0x158] sm:$0xff] %v473
    %538 = vst [vmem:[#allocation7 + $0x160] sm:$0xff] %v474
    %539 = vst [vmem:[#allocation7 + $0x168] sm:$0xff] %v475
    %540 = vst [vmem:[#allocation7 + $0x170] sm:$0xff] %v476
    %541 = vst [vmem:[#allocation7 + $0x178] sm:$0xff] %v477
    %542 = vst [vmem:[#allocation7 + $0x180] sm:$0xff] %v478
    %543 = vst [vmem:[#allocation7 + $0x188] sm:$0xff] %v479
    %544 = vst [vmem:[#allocation7 + $0x190] sm:$0xff] %v480
    %545 = vst [vmem:[#allocation7 + $0x198] sm:$0xff] %v481
    %546 = vst [vmem:[#allocation7 + $0x1a0] sm:$0xff] %v482
    %547 = vst [vmem:[#allocation7 + $0x1a8] sm:$0xff] %v483
    %548 = vst [vmem:[#allocation7 + $0x1b0] sm:$0xff] %v484
    %549 = vst [vmem:[#allocation7 + $0x1b8] sm:$0xff] %v485
    %550 = vst [vmem:[#allocation7 + $0x1c0] sm:$0xff] %v486
    %551 = vst [vmem:[#allocation7 + $0x1c8] sm:$0xff] %v487
    %552 = vst [vmem:[#allocation7 + $0x1d0] sm:$0xff] %v488
    %553 = vst [vmem:[#allocation7 + $0x1d8] sm:$0xff] %v489
    %554 = vst [vmem:[#allocation7 + $0x1e0] sm:$0xff] %v490
    %555 = vst [vmem:[#allocation7 + $0x1e8] sm:$0xff] %v491
    %556 = vst [vmem:[#allocation7 + $0x1f0] sm:$0xff] %v492
    %557 = vst [vmem:[#allocation7 + $0x1f8] sm:$0xff] %v493
    // Predicated region
    $region18: #{tpu_custom_call.1} parent=1 // pred_check
      _
    $region19: #{tpu_custom_call.1} parent=1 // pred_check_branch
      %559 = sbr.rel (0) target = $region21
    $region20: #{tpu_custom_call.1} parent=1 // pred_region
      %561 = vsyncadd [#allocation4], 0
      %s562 = sshll.u32 [#allocation7], 4
      %s563 = int_to_ptr.vmem [resolvable:$true] %s562
      %s564 = sshll.u32 %s2, 4
      %s565 = int_to_ptr.hbm [resolvable:$true] %s564
      %570 = dma.vmem_to_hbm [thread:$0]  %s563, 8192, %s565, [#allocation4], 256, 256, 16
    $region21: #{tpu_custom_call.1} parent=1 // pred_fallthru
      _
    // Predicated region
    $region22: #{tpu_custom_call.1} parent=1 // pred_check
      _
    $region23: #{tpu_custom_call.1} parent=1 // pred_check_branch
      %572 = sbr.rel (0) target = $region25
    $region24: #{tpu_custom_call.1} parent=1 // pred_region
      %574 = dma.done [#allocation4], 8192
    $region25: #{tpu_custom_call.1} parent=1 // pred_fallthru
      _
    %575 = vsyncpa [#allocation3], 1
    %576 = vsyncpa [#allocation6], 1
    %577 = vsyncpa [#allocation4], 1

</llo_original>
